<compile_context>
chip_gen: v6e
topology: v6e:2x2x1
jax: 0.10.0
libtpu: 0.0.40
codegen_flags: <defaults>
</compile_context>

<pallas_src>
import jax
import jax.numpy as jnp
import numpy as np
from jax.experimental import pallas as pl
from jax.experimental.pallas import tpu as pltpu

_LANE = 128  # lane width: last dim of every block is padded to a multiple of this


def _round_up(x, m):
    return (x + m - 1) // m * m


def _translator_kernel(x_ref, w1_ref, w2_ref, o_ref, h_ref):
    # First matmul (MXU, f32 accumulate) + ReLU, staged through VMEM scratch in
    # the compute dtype so a large (tile_m, dim_hid) intermediate never has to
    # live in vregs.
    h = jnp.dot(x_ref[...], w1_ref[...], preferred_element_type=jnp.float32)
    h_ref[...] = jnp.maximum(h, 0.0).astype(h_ref.dtype)
    # Second matmul + ReLU.  Scratch already holds the weight dtype, so the MXU
    # sees matched operands (bf16 x bf16 -> f32 when compute_dtype=bf16; f32
    # otherwise).
    y = jnp.dot(h_ref[...], w2_ref[...], preferred_element_type=jnp.float32)
    o_ref[...] = jnp.maximum(y, 0.0).astype(o_ref.dtype)


def ra_translator_forward(x, trans1, trans2, *, compute_dtype=None,
                          max_tile_m=256,
                          vmem_budget_bytes=48 * 1024 * 1024):
    """relu(relu(x @ trans1) @ trans2) via a single fused Pallas kernel.

    x:      (N, dim_input)
    trans1: (dim_input, dim_hid)
    trans2: (dim_hid, dim_output)
    returns (N, dim_output) in x.dtype
    """
    N, dim_input = x.shape
    di_w, dim_hid = trans1.shape
    dh_w, dim_output = trans2.shape
    assert dim_input == di_w and dim_hid == dh_w

    out_dtype = x.dtype
    compute_dtype = np.dtype(compute_dtype if compute_dtype is not None else x.dtype)
    # bf16 needs a (16, 128) minimum tile; f32 needs (8, 128).
    m_align = 16 if compute_dtype == np.dtype(jnp.bfloat16) else 8

    # Lane-dense padding of every feature dim (biggest measured single lever:
    # avoids masked partial stores and mostly-idle MXU columns).
    di_p = _round_up(dim_input, _LANE)
    dh_p = _round_up(dim_hid, _LANE)
    do_p = _round_up(dim_output, _LANE)

    # --- VMEM budget -> tile_m -------------------------------------------------
    w_itemsize = compute_dtype.itemsize
    o_itemsize = np.dtype(out_dtype).itemsize
    # weights: double-buffered by the pipeline even with a constant index_map.
    w_bytes = 2 * (di_p * dh_p + dh_p * do_p) * w_itemsize

    def tile_footprint(tm):
        io = 2 * tm * (di_p * w_itemsize + do_p * o_itemsize)  # x/out double-buffered
        scratch = tm * dh_p * w_itemsize                       # hidden scratch
        return w_bytes + io + scratch

    tile_m = _round_up(max_tile_m, m_align)
    while tile_m > m_align and tile_footprint(tile_m) > vmem_budget_bytes:
        tile_m -= m_align
    # Never use a tile bigger than the (aligned) batch itself: for small N this
    # collapses the grid to a single step (no per-step pipeline overhead).
    tile_m = max(m_align, min(tile_m, _round_up(N, m_align)))

    N_p = _round_up(N, tile_m)
    grid = (N_p // tile_m,)

    # --- pad & cast operands (exact under zero padding) ------------------------
    x_p = jnp.pad(x.astype(compute_dtype),
                  ((0, N_p - N), (0, di_p - dim_input)))
    w1_p = jnp.pad(trans1.astype(compute_dtype),
                   ((0, di_p - dim_input), (0, dh_p - dim_hid)))
    w2_p = jnp.pad(trans2.astype(compute_dtype),
                   ((0, dh_p - dim_hid), (0, do_p - dim_output)))

    flops = 2 * N_p * (di_p * dh_p + dh_p * do_p)
    bytes_accessed = (x_p.size * w_itemsize + w1_p.size * w_itemsize
                      + w2_p.size * w_itemsize + N_p * do_p * o_itemsize)
    cost = pl.CostEstimate(flops=flops, transcendentals=0,
                           bytes_accessed=bytes_accessed)

    # Scoped VMEM: enough for the footprint with headroom, but <= 56 MiB so it
    # is legal on v7x (64 MiB physical) as well as v5e/v6e (128 MiB).
    vmem_limit = int(min(56 * 1024 * 1024,
                         max(2 * tile_footprint(tile_m), 16 * 1024 * 1024)))

    out_p = pl.pallas_call(
        _translator_kernel,
        out_shape=jax.ShapeDtypeStruct((N_p, do_p), out_dtype),
        grid_spec=pltpu.PrefetchScalarGridSpec(
            num_scalar_prefetch=0,
            grid=grid,
            in_specs=[
                # batch tile of the input
                pl.BlockSpec((tile_m, di_p), lambda i: (i, 0)),
                # full (padded) weight matrices, resident across the grid
                pl.BlockSpec((di_p, dh_p), lambda i: (0, 0)),
                pl.BlockSpec((dh_p, do_p), lambda i: (0, 0)),
            ],
            out_specs=pl.BlockSpec((tile_m, do_p), lambda i: (i, 0)),
            # staging buffer for the ReLU'd hidden activations (compute dtype)
            scratch_shapes=[pltpu.VMEM((tile_m, dh_p), compute_dtype)],
        ),
        compiler_params=pltpu.CompilerParams(
            dimension_semantics=("parallel",),  # v7x: shard batch tiles over 2 TCs
            vmem_limit_bytes=vmem_limit,
        ),
        cost_estimate=cost,
    )(x_p, w1_p, w2_p)

    # Strip the batch / feature padding.
    return out_p[:N, :dim_output]


if __name__ == "__main__":
    # Small shapes consistent with the module: N spots, dim_input reference
    # genes, dim_hid hidden units, dim_output target genes.
    N, dim_input, dim_hid, dim_output = 16, 32, 64, 16

    key = jax.random.PRNGKey(0)
    kx, k1, k2 = jax.random.split(key, 3)

    x = jax.random.normal(kx, (N, dim_input), dtype=jnp.float32)
    trans1 = jax.random.normal(k1, (dim_input, dim_hid), dtype=jnp.float32)
    trans2 = jax.random.normal(k2, (dim_hid, dim_output), dtype=jnp.float32)

    # Pure-JAX reference of the module's forward.
    ref = jnp.maximum(jnp.maximum(x @ trans1, 0.0) @ trans2, 0.0)

    # f32 path: exact semantics of the PyTorch module.
    out = jax.block_until_ready(ra_translator_forward(x, trans1, trans2))
    assert out.shape == (N, dim_output)
    assert jnp.allclose(out, ref, atol=1e-4, rtol=1e-4), "f32 mismatch vs reference"

    # bf16-operand path (f32 MXU accumulation): ~2x MXU throughput on v6e/v7x.
    out_bf16 = jax.block_until_ready(
        ra_translator_forward(x, trans1, trans2, compute_dtype=jnp.bfloat16))
    assert out_bf16.shape == (N, dim_output)
    assert jnp.allclose(out_bf16, ref, atol=2.0, rtol=1e-1), "bf16 path diverged"

    print("KERNEL_OK")
</pallas_src>

<mosaic_0001>
module attributes {stable_mosaic.version = 11 : i64} {
  func.func @_translator_kernel(%arg0: i32, %arg1: memref<16x128xf32, #tpu.memory_space<vmem>>, %arg2: memref<128x128xf32, #tpu.memory_space<vmem>>, %arg3: memref<128x128xf32, #tpu.memory_space<vmem>>, %arg4: memref<16x128xf32, #tpu.memory_space<vmem>>, %arg5: memref<16x128xf32, #tpu.memory_space<vmem>>) attributes {dimension_semantics = [#tpu.dimension_semantics<parallel>], iteration_bounds = array<i64: 1>, scalar_prefetch = 0 : i64, scratch_operands = 1 : i64, tpu.core_type = #tpu.core_type<tc>, window_params = [{transform_indices = @transform_0, window_bounds = array<i64: 16, 128>}, {pipeline_mode = #tpu.pipeline_mode<synchronous>, transform_indices = @transform_1, window_bounds = array<i64: 128, 128>}, {pipeline_mode = #tpu.pipeline_mode<synchronous>, transform_indices = @transform_2, window_bounds = array<i64: 128, 128>}, {transform_indices = @transform_3, window_bounds = array<i64: 16, 128>}]} {
    %c0 = arith.constant 0 : index
    %c0_0 = arith.constant 0 : index
    %0 = vector.load %arg1[%c0, %c0_0] : memref<16x128xf32, #tpu.memory_space<vmem>>, vector<16x128xf32>
    %c0_1 = arith.constant 0 : index
    %c0_2 = arith.constant 0 : index
    %1 = vector.load %arg2[%c0_1, %c0_2] : memref<128x128xf32, #tpu.memory_space<vmem>>, vector<128x128xf32>
    %cst = arith.constant dense<0.000000e+00> : vector<16x128xf32>
    %2 = tpu.matmul %0, %1, %cst {dimension_numbers = #tpu.dot_dimension_numbers<[1], [0], [0], [1], [0, 0, 1, 1], [], []>} : vector<16x128xf32>, vector<128x128xf32>, vector<16x128xf32> -> vector<16x128xf32>
    %cst_3 = arith.constant 0.000000e+00 : f32
    %3 = vector.broadcast %cst_3 : f32 to vector<16x128xf32>
    %4 = arith.maximumf %2, %3 : vector<16x128xf32>
    %c0_4 = arith.constant 0 : index
    %c0_5 = arith.constant 0 : index
    %5 = vector.load %arg5[%c0_4, %c0_5] : memref<16x128xf32, #tpu.memory_space<vmem>>, vector<16x128xf32>
    tpu.vector_store %arg5[%c0_4, %c0_5], %4 {strides = array<i32>} : memref<16x128xf32, #tpu.memory_space<vmem>>, vector<16x128xf32>,
    %c0_6 = arith.constant 0 : index
    %c0_7 = arith.constant 0 : index
    %6 = vector.load %arg5[%c0_6, %c0_7] : memref<16x128xf32, #tpu.memory_space<vmem>>, vector<16x128xf32>
    %c0_8 = arith.constant 0 : index
    %c0_9 = arith.constant 0 : index
    %7 = vector.load %arg3[%c0_8, %c0_9] : memref<128x128xf32, #tpu.memory_space<vmem>>, vector<128x128xf32>
    %cst_10 = arith.constant dense<0.000000e+00> : vector<16x128xf32>
    %8 = tpu.matmul %6, %7, %cst_10 {dimension_numbers = #tpu.dot_dimension_numbers<[1], [0], [0], [1], [0, 0, 1, 1], [], []>} : vector<16x128xf32>, vector<128x128xf32>, vector<16x128xf32> -> vector<16x128xf32>
    %cst_11 = arith.constant 0.000000e+00 : f32
    %9 = vector.broadcast %cst_11 : f32 to vector<16x128xf32>
    %10 = arith.maximumf %8, %9 : vector<16x128xf32>
    %c0_12 = arith.constant 0 : index
    %c0_13 = arith.constant 0 : index
    %11 = vector.load %arg4[%c0_12, %c0_13] : memref<16x128xf32, #tpu.memory_space<vmem>>, vector<16x128xf32>
    tpu.vector_store %arg4[%c0_12, %c0_13], %10 {strides = array<i32>} : memref<16x128xf32, #tpu.memory_space<vmem>>, vector<16x128xf32>,
    return
  }
  func.func @transform_0(%arg0: i32) -> (i32, i32) {
    %c0_i32 = arith.constant 0 : i32
    %c0_i32_0 = arith.constant 0 : i32
    return %arg0, %c0_i32 : i32, i32
  }
  func.func @transform_1(%arg0: i32) -> (i32, i32) {
    %c0_i32 = arith.constant 0 : i32
    %c0_i32_0 = arith.constant 0 : i32
    %c0_i32_1 = arith.constant 0 : i32
    return %c0_i32, %c0_i32_0 : i32, i32
  }
  func.func @transform_2(%arg0: i32) -> (i32, i32) {
    %c0_i32 = arith.constant 0 : i32
    %c0_i32_0 = arith.constant 0 : i32
    %c0_i32_1 = arith.constant 0 : i32
    return %c0_i32, %c0_i32_0 : i32, i32
  }
  func.func @transform_3(%arg0: i32) -> (i32, i32) {
    %c0_i32 = arith.constant 0 : i32
    %c0_i32_0 = arith.constant 0 : i32
    return %arg0, %c0_i32 : i32, i32
  }
}

</mosaic_0001>

<llo_original>
// kernel: tpu_custom_call.1
$region0: #{tpu_custom_call.1}
  #allocation0 [shape = 'u32[]', space=smem, size = 0x4, offset = 0x4, fixed_abs, tag = 'smem constant byte address 0x4 - core index']
  #allocation1 [shape = 'u32[144,128]{1,0:T(1,128)}', space=vmem, size = 0x12000, scoped, tag = 'internal scratch']
  #allocation2 [shape = 'f32[16,128]{1,0:T(8,128)}', space=vmem, size = 0x2000, scoped, tag = 'scratch operand']
  %s0 = inlined_call_operand.hbm [shape: f32[16,128], index: 0, kind: input, shape index: {}]
  %s1 = inlined_call_operand.hbm [shape: f32[128,128], index: 1, kind: input, shape index: {}]
  %s2 = inlined_call_operand.hbm [shape: f32[128,128], index: 2, kind: input, shape index: {}]
  %s3 = inlined_call_operand.hbm [shape: f32[16,128], index: 3, kind: output, shape index: {}]
  %s4 = sld [smem:[#allocation0]]
  $region34: #{tpu_custom_call.1} parent=0
    _
  %s6 = ssub.s32 1, %s4
  %s7 = scalar_select 0, %s6, %s4
  $region1: #{tpu_custom_call.1} parent=0
    #allocation3 [shape = 'u8[8192]{0}', space=vmem, size = 0x2000, scoped, tag = 'input window, operand 0, single buffered']
    #allocation4 [shape = 's32[1]{0}', space=sflag, size = 0x4, scoped, tag = 'scoped memory for tpu_custom_call.1']
    #allocation5 [shape = 's32[1]{0}', space=sflag, size = 0x4, scoped, tag = 'scoped memory for tpu_custom_call.1']
    #allocation6 [shape = 'u8[65536]{0}', space=vmem, size = 0x10000, scoped, tag = 'input window, operand 1, single buffered']
    #allocation7 [shape = 's32[1]{0}', space=sflag, size = 0x4, scoped, tag = 'scoped memory for tpu_custom_call.1']
    #allocation8 [shape = 'u8[65536]{0}', space=vmem, size = 0x10000, scoped, tag = 'input window, operand 2, single buffered']
    #allocation9 [shape = 'u8[8192]{0}', space=vmem, size = 0x2000, scoped, tag = 'output window, operand 0, single buffered']
    %8 = vsyncpa [#allocation4], 0
    %9 = vsyncpa [#allocation7], 0
    %10 = vsyncpa [#allocation5], 0
    // Predicated region
    $region2: #{tpu_custom_call.1} parent=1 // pred_check
      _
    $region3: #{tpu_custom_call.1} parent=1 // pred_check_branch
      %12 = sbr.rel (0) target = $region5
    $region4: #{tpu_custom_call.1} parent=1 // pred_region
      %s14 = ssub.s32 256, 256
      %15 = vsyncadd [#allocation4], %s14
      %s16 = sshll.u32 [#allocation3], 4
      %s17 = int_to_ptr.vmem [resolvable:$true] %s16
      %22 = dma.hbm_to_vmem [thread:$0]  %s0, 256, %s17, [#allocation4], 128, 128, 8
    $region5: #{tpu_custom_call.1} parent=1 // pred_fallthru
      _
    // Predicated region
    $region6: #{tpu_custom_call.1} parent=1 // pred_check
      _
    $region7: #{tpu_custom_call.1} parent=1 // pred_check_branch
      %24 = sbr.rel (0) target = $region9
    $region8: #{tpu_custom_call.1} parent=1 // pred_region
      %s26 = ssub.s32 2048, 2048
      %27 = vsyncadd [#allocation7], %s26
      %s28 = sshll.u32 [#allocation6], 4
      %s29 = int_to_ptr.vmem [resolvable:$true] %s28
      %34 = dma.hbm_to_vmem [thread:$0]  %s1, 2048, %s29, [#allocation7], 128, 128, 8
    $region9: #{tpu_custom_call.1} parent=1 // pred_fallthru
      _
    // Predicated region
    $region10: #{tpu_custom_call.1} parent=1 // pred_check
      _
    $region11: #{tpu_custom_call.1} parent=1 // pred_check_branch
      %36 = sbr.rel (0) target = $region13
    $region12: #{tpu_custom_call.1} parent=1 // pred_region
      %s38 = ssub.s32 2048, 2048
      %39 = vsyncadd [#allocation7], %s38
      %s40 = sshll.u32 [#allocation8], 4
      %s41 = int_to_ptr.vmem [resolvable:$true] %s40
      %46 = dma.hbm_to_vmem [thread:$0]  %s2, 2048, %s41, [#allocation7], 128, 128, 8
    $region13: #{tpu_custom_call.1} parent=1 // pred_fallthru
      _
    // Predicated region
    $region14: #{tpu_custom_call.1} parent=1 // pred_check
      _
    $region15: #{tpu_custom_call.1} parent=1 // pred_check_branch
      %48 = sbr.rel (0) target = $region17
    $region16: #{tpu_custom_call.1} parent=1 // pred_region
      %49 = dma.done [#allocation4], 256
    $region17: #{tpu_custom_call.1} parent=1 // pred_fallthru
      _
    // Predicated region
    $region18: #{tpu_custom_call.1} parent=1 // pred_check
      _
    $region19: #{tpu_custom_call.1} parent=1 // pred_check_branch
      %51 = sbr.rel (0) target = $region21
    $region20: #{tpu_custom_call.1} parent=1 // pred_region
      %52 = dma.done [#allocation7], 2048
    $region21: #{tpu_custom_call.1} parent=1 // pred_fallthru
      _
    // Predicated region
    $region22: #{tpu_custom_call.1} parent=1 // pred_check
      _
    $region23: #{tpu_custom_call.1} parent=1 // pred_check_branch
      %54 = sbr.rel (0) target = $region25
    $region24: #{tpu_custom_call.1} parent=1 // pred_region
      %55 = dma.done [#allocation7], 2048
    $region25: #{tpu_custom_call.1} parent=1 // pred_fallthru
      _
    %v56 = vld [vmem:[#allocation3] sm:$0xff]
    %v57 = vld [vmem:[#allocation3 + $0x8] sm:$0xff]
    %v58 = vld [vmem:[#allocation6] sm:$0xff]
    %v59 = vld [vmem:[#allocation6 + $0x8] sm:$0xff]
    %v60 = vld [vmem:[#allocation6 + $0x10] sm:$0xff]
    %v61 = vld [vmem:[#allocation6 + $0x18] sm:$0xff]
    %v62 = vld [vmem:[#allocation6 + $0x20] sm:$0xff]
    %v63 = vld [vmem:[#allocation6 + $0x28] sm:$0xff]
    %v64 = vld [vmem:[#allocation6 + $0x30] sm:$0xff]
    %v65 = vld [vmem:[#allocation6 + $0x38] sm:$0xff]
    %v66 = vld [vmem:[#allocation6 + $0x40] sm:$0xff]
    %v67 = vld [vmem:[#allocation6 + $0x48] sm:$0xff]
    %v68 = vld [vmem:[#allocation6 + $0x50] sm:$0xff]
    %v69 = vld [vmem:[#allocation6 + $0x58] sm:$0xff]
    %v70 = vld [vmem:[#allocation6 + $0x60] sm:$0xff]
    %v71 = vld [vmem:[#allocation6 + $0x68] sm:$0xff]
    %v72 = vld [vmem:[#allocation6 + $0x70] sm:$0xff]
    %v73 = vld [vmem:[#allocation6 + $0x78] sm:$0xff]
    %74 = vmatprep.subr.mxu0 0.0
    %75 = vmatpush1.msra.mxu0 %v73
    %76 = vmatprep.subr.mxu0 0.0
    %77 = vmatpush1.msra.mxu0 %v72
    %78 = vmatprep.subr.mxu0 0.0
    %79 = vmatpush1.msra.mxu0 %v71
    %80 = vmatprep.subr.mxu0 0.0
    %81 = vmatpush1.msra.mxu0 %v70
    %82 = vmatprep.subr.mxu0 0.0
    %83 = vmatpush1.msra.mxu0 %v69
    %84 = vmatprep.subr.mxu0 0.0
    %85 = vmatpush1.msra.mxu0 %v68
    %86 = vmatprep.subr.mxu0 0.0
    %87 = vmatpush1.msra.mxu0 %v67
    %88 = vmatprep.subr.mxu0 0.0
    %89 = vmatpush1.msra.mxu0 %v66
    %90 = vmatprep.subr.mxu0 0.0
    %91 = vmatpush1.msra.mxu0 %v65
    %92 = vmatprep.subr.mxu0 0.0
    %93 = vmatpush1.msra.mxu0 %v64
    %94 = vmatprep.subr.mxu0 0.0
    %95 = vmatpush1.msra.mxu0 %v63
    %96 = vmatprep.subr.mxu0 0.0
    %97 = vmatpush1.msra.mxu0 %v62
    %98 = vmatprep.subr.mxu0 0.0
    %99 = vmatpush1.msra.mxu0 %v61
    %100 = vmatprep.subr.mxu0 0.0
    %101 = vmatpush1.msra.mxu0 %v60
    %102 = vmatprep.subr.mxu0 0.0
    %103 = vmatpush1.msra.mxu0 %v59
    %104 = vmatprep.subr.mxu0 0.0
    %105 = vmatpush1.msra.mxu0 %v58
    %106 = vmatprep.subr.mxu0 0.0
    %107 = vmatpush2.msra.mxu0 0.0
    %108 = vmatprep.subr.mxu0 0.0
    %109 = vmatpush2.msra.mxu0 0.0
    %110 = vmatprep.subr.mxu0 0.0
    %111 = vmatpush2.msra.mxu0 0.0
    %112 = vmatprep.subr.mxu0 0.0
    %113 = vmatpush2.msra.mxu0 0.0
    %114 = vmatprep.subr.mxu0 0.0
    %115 = vmatpush2.msra.mxu0 0.0
    %116 = vmatprep.subr.mxu0 0.0
    %117 = vmatpush2.msra.mxu0 0.0
    %118 = vmatprep.subr.mxu0 0.0
    %119 = vmatpush2.msra.mxu0 0.0
    %120 = vmatprep.subr.mxu0 0.0
    %121 = vmatpush2.msra.mxu0 0.0
    %122 = vmatprep.subr.mxu0 0.0
    %123 = vmatpush2.msra.mxu0 0.0
    %124 = vmatprep.subr.mxu0 0.0
    %125 = vmatpush2.msra.mxu0 0.0
    %126 = vmatprep.subr.mxu0 0.0
    %127 = vmatpush2.msra.mxu0 0.0
    %128 = vmatprep.subr.mxu0 0.0
    %129 = vmatpush2.msra.mxu0 0.0
    %130 = vmatprep.subr.mxu0 0.0
    %131 = vmatpush2.msra.mxu0 0.0
    %132 = vmatprep.subr.mxu0 0.0
    %133 = vmatpush2.msra.mxu0 0.0
    %134 = vmatprep.subr.mxu0 0.0
    %135 = vmatpush2.msra.mxu0 0.0
    %136 = vmatprep.subr.mxu0 0.0
    %137 = vmatpush2.msra.mxu0 0.0
    %138 = vmatprep.mubr.f32.mxu0 0.0
    %139 = vmatmul.mubr.f32.gmra.mxu0 %v56
    %v140 = vpop.f32.mrf.mxu0
    %v141 = vadd.f32 0.0, %v140
    %v142 = vpop.f32.mrf.mxu0
    %143 = vmatprep.mubr.f32.mxu0 0.0
    %144 = vmatmul.mubr.f32.gmra.mxu0 %v57
    %v145 = vpop.f32.mrf.mxu0
    %v146 = vadd.f32 0.0, %v145
    %v147 = vpop.f32.mrf.mxu0
    %148 = vdwg.mxu0
    %v149 = vmax.f32 %v141, 0.0
    %v150 = vmax.f32 %v146, 0.0
    %151 = vst [vmem:[#allocation2] sm:$0xff] %v149
    %152 = vst [vmem:[#allocation2 + $0x8] sm:$0xff] %v150
    %v153 = vld [vmem:[#allocation2] sm:$0xff]
    %v154 = vld [vmem:[#allocation2 + $0x8] sm:$0xff]
    %v155 = vld [vmem:[#allocation8] sm:$0xff]
    %v156 = vld [vmem:[#allocation8 + $0x8] sm:$0xff]
    %v157 = vld [vmem:[#allocation8 + $0x10] sm:$0xff]
    %v158 = vld [vmem:[#allocation8 + $0x18] sm:$0xff]
    %v159 = vld [vmem:[#allocation8 + $0x20] sm:$0xff]
    %v160 = vld [vmem:[#allocation8 + $0x28] sm:$0xff]
    %v161 = vld [vmem:[#allocation8 + $0x30] sm:$0xff]
    %v162 = vld [vmem:[#allocation8 + $0x38] sm:$0xff]
    %v163 = vld [vmem:[#allocation8 + $0x40] sm:$0xff]
    %v164 = vld [vmem:[#allocation8 + $0x48] sm:$0xff]
    %v165 = vld [vmem:[#allocation8 + $0x50] sm:$0xff]
    %v166 = vld [vmem:[#allocation8 + $0x58] sm:$0xff]
    %v167 = vld [vmem:[#allocation8 + $0x60] sm:$0xff]
    %v168 = vld [vmem:[#allocation8 + $0x68] sm:$0xff]
    %v169 = vld [vmem:[#allocation8 + $0x70] sm:$0xff]
    %v170 = vld [vmem:[#allocation8 + $0x78] sm:$0xff]
    %171 = vmatprep.subr.mxu0 0.0
    %172 = vmatpush1.msra.mxu0 %v170
    %173 = vmatprep.subr.mxu0 0.0
    %174 = vmatpush1.msra.mxu0 %v169
    %175 = vmatprep.subr.mxu0 0.0
    %176 = vmatpush1.msra.mxu0 %v168
    %177 = vmatprep.subr.mxu0 0.0
    %178 = vmatpush1.msra.mxu0 %v167
    %179 = vmatprep.subr.mxu0 0.0
    %180 = vmatpush1.msra.mxu0 %v166
    %181 = vmatprep.subr.mxu0 0.0
    %182 = vmatpush1.msra.mxu0 %v165
    %183 = vmatprep.subr.mxu0 0.0
    %184 = vmatpush1.msra.mxu0 %v164
    %185 = vmatprep.subr.mxu0 0.0
    %186 = vmatpush1.msra.mxu0 %v163
    %187 = vmatprep.subr.mxu0 0.0
    %188 = vmatpush1.msra.mxu0 %v162
    %189 = vmatprep.subr.mxu0 0.0
    %190 = vmatpush1.msra.mxu0 %v161
    %191 = vmatprep.subr.mxu0 0.0
    %192 = vmatpush1.msra.mxu0 %v160
    %193 = vmatprep.subr.mxu0 0.0
    %194 = vmatpush1.msra.mxu0 %v159
    %195 = vmatprep.subr.mxu0 0.0
    %196 = vmatpush1.msra.mxu0 %v158
    %197 = vmatprep.subr.mxu0 0.0
    %198 = vmatpush1.msra.mxu0 %v157
    %199 = vmatprep.subr.mxu0 0.0
    %200 = vmatpush1.msra.mxu0 %v156
    %201 = vmatprep.subr.mxu0 0.0
    %202 = vmatpush1.msra.mxu0 %v155
    %203 = vmatprep.subr.mxu0 0.0
    %204 = vmatpush2.msra.mxu0 0.0
    %205 = vmatprep.subr.mxu0 0.0
    %206 = vmatpush2.msra.mxu0 0.0
    %207 = vmatprep.subr.mxu0 0.0
    %208 = vmatpush2.msra.mxu0 0.0
    %209 = vmatprep.subr.mxu0 0.0
    %210 = vmatpush2.msra.mxu0 0.0
    %211 = vmatprep.subr.mxu0 0.0
    %212 = vmatpush2.msra.mxu0 0.0
    %213 = vmatprep.subr.mxu0 0.0
    %214 = vmatpush2.msra.mxu0 0.0
    %215 = vmatprep.subr.mxu0 0.0
    %216 = vmatpush2.msra.mxu0 0.0
    %217 = vmatprep.subr.mxu0 0.0
    %218 = vmatpush2.msra.mxu0 0.0
    %219 = vmatprep.subr.mxu0 0.0
    %220 = vmatpush2.msra.mxu0 0.0
    %221 = vmatprep.subr.mxu0 0.0
    %222 = vmatpush2.msra.mxu0 0.0
    %223 = vmatprep.subr.mxu0 0.0
    %224 = vmatpush2.msra.mxu0 0.0
    %225 = vmatprep.subr.mxu0 0.0
    %226 = vmatpush2.msra.mxu0 0.0
    %227 = vmatprep.subr.mxu0 0.0
    %228 = vmatpush2.msra.mxu0 0.0
    %229 = vmatprep.subr.mxu0 0.0
    %230 = vmatpush2.msra.mxu0 0.0
    %231 = vmatprep.subr.mxu0 0.0
    %232 = vmatpush2.msra.mxu0 0.0
    %233 = vmatprep.subr.mxu0 0.0
    %234 = vmatpush2.msra.mxu0 0.0
    %235 = vmatprep.mubr.f32.mxu0 0.0
    %236 = vmatmul.mubr.f32.gmra.mxu0 %v153
    %v237 = vpop.f32.mrf.mxu0
    %v238 = vadd.f32 0.0, %v237
    %v239 = vpop.f32.mrf.mxu0
    %240 = vmatprep.mubr.f32.mxu0 0.0
    %241 = vmatmul.mubr.f32.gmra.mxu0 %v154
    %v242 = vpop.f32.mrf.mxu0
    %v243 = vadd.f32 0.0, %v242
    %v244 = vpop.f32.mrf.mxu0
    %245 = vdwg.mxu0
    %v246 = vmax.f32 %v238, 0.0
    %v247 = vmax.f32 %v243, 0.0
    %248 = vst [vmem:[#allocation9] sm:$0xff] %v246
    %249 = vst [vmem:[#allocation9 + $0x8] sm:$0xff] %v247
    // Predicated region
    $region26: #{tpu_custom_call.1} parent=1 // pred_check
      _
    $region27: #{tpu_custom_call.1} parent=1 // pred_check_branch
      %251 = sbr.rel (0) target = $region29
    $region28: #{tpu_custom_call.1} parent=1 // pred_region
      %s253 = ssub.s32 256, 256
      %254 = vsyncadd [#allocation5], %s253
      %s255 = sshll.u32 [#allocation9], 4
      %s256 = int_to_ptr.vmem [resolvable:$true] %s255
      %261 = dma.vmem_to_hbm [thread:$0]  %s256, 256, %s3, [#allocation5], 128, 128, 8
    $region29: #{tpu_custom_call.1} parent=1 // pred_fallthru
      _
    // Predicated region
    $region30: #{tpu_custom_call.1} parent=1 // pred_check
      _
    $region31: #{tpu_custom_call.1} parent=1 // pred_check_branch
      %263 = sbr.rel (0) target = $region33
    $region32: #{tpu_custom_call.1} parent=1 // pred_region
      %264 = dma.done [#allocation5], 256
    $region33: #{tpu_custom_call.1} parent=1 // pred_fallthru
      _
    %265 = vsyncpa [#allocation4], 1
    %266 = vsyncpa [#allocation7], 1
    %267 = vsyncpa [#allocation5], 1

</llo_original>
